<compile_context>
chip_gen: v7x
topology: tpu7x:2x2x1
jax: 0.10.0
libtpu: 0.0.40
codegen_flags: <defaults>
</compile_context>

<pallas_src>
import jax
import jax.numpy as jnp
from jax.experimental import pallas as pl
from jax.experimental.pallas import tpu as pltpu

_SOFTPLUS_THRESHOLD = 20.0            # matches torch.nn.functional.softplus default
_SINGLE_BLOCK_BYTES = 256 * 1024      # below this: one block, no pipelining
_MIN_BLOCKS = 8                       # above it: keep >= 8 grid steps
_JNP_FALLBACK_ELEMS = 1024            # tiny tensors: not worth a kernel launch


def _device_kind() -> str:
    try:
        return jax.devices()[0].device_kind.lower()
    except Exception:
        return ""


def _target_block_bytes() -> int:
    kind = _device_kind()
    if "v5" in kind:                  # v5e: 16 MiB default scoped VMEM -> stay at 2 MiB
        return 2 * 1024 * 1024
    return 4 * 1024 * 1024            # v6e / v7x: 32 MiB default scoped VMEM


def _mish_kernel(x_ref, o_ref):
    xf = x_ref[...].astype(jnp.float32)
    # tanh(softplus(x)) = (u^2 - 1)/(u^2 + 1), u = 1 + e^x
    #                   = t*(t + 2) / (t*(t + 2) + 2),  t = e^x   (single exp)
    t = jnp.exp(jnp.minimum(xf, _SOFTPLUS_THRESHOLD))
    num = t * (t + 2.0)
    y = xf * (num / (num + 2.0))
    # For x > 20, softplus(x) == x and tanh(x) == 1 in f32, so mish(x) == x.
    y = jnp.where(xf > _SOFTPLUS_THRESHOLD, xf, y)
    o_ref[...] = y.astype(o_ref.dtype)


def _mish_jnp(x):
    """Pure-jnp mish with the same semantics (tails / tiny tensors / reference)."""
    xf = x.astype(jnp.float32)
    sp = jnp.where(xf > _SOFTPLUS_THRESHOLD, xf,
                   jnp.log1p(jnp.exp(jnp.minimum(xf, _SOFTPLUS_THRESHOLD))))
    return (xf * jnp.tanh(sp)).astype(x.dtype)


def _choose_lane_width(total):
    """Widest lane width (multiple of 128) that divides `total`, else None."""
    for w in (1024, 512, 256, 128):
        if total % w == 0:
            return w
    return None


def _mish_2d(x2d: jax.Array) -> jax.Array:
    """Run the kernel on a lane-dense (rows, w) slab; w is a multiple of 128."""
    rows, w = x2d.shape
    dtype = x2d.dtype
    itemsize = jnp.dtype(dtype).itemsize
    packing = max(8, 32 // itemsize)          # packed sublanes: 8 f32, 16 bf16
    total_bytes = rows * w * itemsize

    if total_bytes <= _SINGLE_BLOCK_BYTES:
        # Small slab: one block, no per-step overhead.
        block_rows = rows
        num_blocks = 1
    else:
        target = _target_block_bytes()
        tgt_rows = max(packing, (target // (w * itemsize)) // packing * packing)
        # Cap block rows so the grid has at least _MIN_BLOCKS steps: keeps both
        # v7x TensorCores busy and overlaps input/output DMA streams.
        cap_rows = max(packing, (pl.cdiv(rows, _MIN_BLOCKS) // packing) * packing)
        block_rows = min(rows, tgt_rows, cap_rows)
        num_blocks = pl.cdiv(rows, block_rows)   # partial last block masked by Pallas

    in_spec = pl.BlockSpec((block_rows, w), lambda i: (i, 0))
    if num_blocks >= 2 and "v7" in _device_kind() and hasattr(pl, "Buffered"):
        try:
            # v7x: 3-deep input buffering hides the short per-block DMA latency.
            in_spec = pl.BlockSpec((block_rows, w), lambda i: (i, 0),
                                   pipeline_mode=pl.Buffered(3))
        except Exception:
            in_spec = pl.BlockSpec((block_rows, w), lambda i: (i, 0))

    return pl.pallas_call(
        _mish_kernel,
        out_shape=jax.ShapeDtypeStruct((rows, w), dtype),
        grid_spec=pltpu.PrefetchScalarGridSpec(
            num_scalar_prefetch=0,
            grid=(num_blocks,),
            in_specs=[in_spec],
            out_specs=pl.BlockSpec((block_rows, w), lambda i: (i, 0)),
        ),
        compiler_params=pltpu.CompilerParams(
            dimension_semantics=("parallel",),   # shard grid across v7x's two TCs
        ),
    )(x2d)


def mish(x: jax.Array) -> jax.Array:
    """Elementwise Mish: x * tanh(softplus(x)), matching the PyTorch module."""
    orig_shape = x.shape
    total = x.size
    if total == 0:
        return x
    flat = x.reshape(-1)

    if total < _JNP_FALLBACK_ELEMS:
        # Too small to amortize a kernel launch (also covers tiny ragged shapes).
        return _mish_jnp(flat).reshape(orig_shape)

    w = _choose_lane_width(total)
    if w is not None:
        # Aligned (common) case: free reshape to a lane-dense slab; no pad, no slice.
        return _mish_2d(flat.reshape(total // w, w)).reshape(orig_shape)

    # Ragged case: kernel on the 1024-aligned prefix, plain jnp on the short tail.
    # TODO(synk): a rank-1 BlockSpec with a masked partial block would also avoid
    # the concatenate copy; kept simple/robust since ragged sizes are rare.
    w = 1024
    n_main = (total // w) * w
    main_out = _mish_2d(flat[:n_main].reshape(n_main // w, w)).reshape(-1)
    tail_out = _mish_jnp(flat[n_main:])
    return jnp.concatenate([main_out, tail_out]).reshape(orig_shape)


if __name__ == "__main__":
    # Primary case: NCHW activation, aligned path (2048 elems -> (2, 1024) slab, 1 block).
    x = jax.random.normal(jax.random.PRNGKey(0), (2, 4, 16, 16), dtype=jnp.float32) * 5.0
    y_ref = _mish_jnp(x)
    y = jax.block_until_ready(mish(x))
    assert y.shape == x.shape and y.dtype == x.dtype
    assert jnp.allclose(y, y_ref, atol=1e-5, rtol=1e-5), "mismatch vs reference (aligned)"

    # Ragged tiny tensor: exercises the pure-jnp fallback path.
    x2 = jax.random.normal(jax.random.PRNGKey(1), (3, 5, 7), dtype=jnp.float32) * 5.0
    y2_ref = _mish_jnp(x2)
    y2 = jax.block_until_ready(mish(x2))
    assert jnp.allclose(y2, y2_ref, atol=1e-5, rtol=1e-5), "mismatch vs reference (ragged)"

    # Larger aligned tensor: exercises the multi-block pipelined path with a
    # partial (masked) last block: 256000 elems -> (250, 1024), 8 grid steps.
    x3 = jax.random.normal(jax.random.PRNGKey(2), (2, 125, 32, 32), dtype=jnp.float32) * 5.0
    y3_ref = _mish_jnp(x3)
    y3 = jax.block_until_ready(mish(x3))
    assert jnp.allclose(y3, y3_ref, atol=1e-5, rtol=1e-5), "mismatch vs reference (multi-block)"

    print("KERNEL_OK")
</pallas_src>

<mosaic_0001>
module attributes {stable_mosaic.version = 11 : i64} {
  func.func @_mish_kernel(%arg0: i32, %arg1: memref<2x1024xf32, #tpu.memory_space<vmem>>, %arg2: memref<2x1024xf32, #tpu.memory_space<vmem>>) attributes {dimension_semantics = [#tpu.dimension_semantics<parallel>], iteration_bounds = array<i64: 1>, scalar_prefetch = 0 : i64, scratch_operands = 0 : i64, tpu.core_type = #tpu.core_type<tc>, window_params = [{transform_indices = @transform_0, window_bounds = array<i64: 2, 1024>}, {transform_indices = @transform_1, window_bounds = array<i64: 2, 1024>}]} {
    %c0 = arith.constant 0 : index
    %c0_0 = arith.constant 0 : index
    %0 = vector.load %arg1[%c0, %c0_0] : memref<2x1024xf32, #tpu.memory_space<vmem>>, vector<2x1024xf32>
    %cst = arith.constant 2.000000e+01 : f32
    %1 = vector.broadcast %cst : f32 to vector<2x1024xf32>
    %2 = arith.minimumf %0, %1 : vector<2x1024xf32>
    %3 = math.exp %2 : vector<2x1024xf32>
    %cst_1 = arith.constant 2.000000e+00 : f32
    %4 = vector.broadcast %cst_1 : f32 to vector<2x1024xf32>
    %5 = arith.addf %3, %4 : vector<2x1024xf32>
    %6 = arith.mulf %3, %5 : vector<2x1024xf32>
    %cst_2 = arith.constant 2.000000e+00 : f32
    %7 = vector.broadcast %cst_2 : f32 to vector<2x1024xf32>
    %8 = arith.addf %6, %7 : vector<2x1024xf32>
    %9 = arith.divf %6, %8 : vector<2x1024xf32>
    %10 = arith.mulf %0, %9 : vector<2x1024xf32>
    %cst_3 = arith.constant 2.000000e+01 : f32
    %11 = vector.broadcast %cst_3 : f32 to vector<2x1024xf32>
    %12 = arith.cmpf ogt, %0, %11 : vector<2x1024xf32>
    %13 = arith.select %12, %0, %10 : vector<2x1024xi1>, vector<2x1024xf32>
    %c0_4 = arith.constant 0 : index
    %c0_5 = arith.constant 0 : index
    %14 = vector.load %arg2[%c0_4, %c0_5] : memref<2x1024xf32, #tpu.memory_space<vmem>>, vector<2x1024xf32>
    tpu.vector_store %arg2[%c0_4, %c0_5], %13 {strides = array<i32>} : memref<2x1024xf32, #tpu.memory_space<vmem>>, vector<2x1024xf32>,
    return
  }
  func.func @transform_0(%arg0: i32) -> (i32, i32) {
    %c0_i32 = arith.constant 0 : i32
    %c0_i32_0 = arith.constant 0 : i32
    return %arg0, %c0_i32 : i32, i32
  }
  func.func @transform_1(%arg0: i32) -> (i32, i32) {
    %c0_i32 = arith.constant 0 : i32
    %c0_i32_0 = arith.constant 0 : i32
    return %arg0, %c0_i32 : i32, i32
  }
}

</mosaic_0001>

<llo_original>
// kernel: tpu_custom_call.1
$region0: #{tpu_custom_call.1}
  #allocation0 [shape = 'u32[]', space=smem, size = 0x4, offset = 0x4, fixed_abs, tag = 'smem constant byte address 0x4 - core index']
  #allocation1 [shape = 'u32[144,128]{1,0:T(1,128)}', space=vmem, size = 0x12000, scoped, tag = 'internal scratch']
  %s0 = inlined_call_operand.hbm [shape: f32[2,1024], index: 0, kind: input, shape index: {}]
  %s1 = inlined_call_operand.hbm [shape: f32[2,1024], index: 1, kind: output, shape index: {}]
  %s2 = sld [smem:[#allocation0]]
  $region18: #{tpu_custom_call.1} parent=0
    _
  %s4 = ssub.s32 1, %s2
  %s5 = scalar_select 0, %s4, %s2
  $region1: #{tpu_custom_call.1} parent=0
    #allocation2 [shape = 'u8[8192]{0}', space=vmem, size = 0x2000, scoped, tag = 'input window, operand 0, single buffered']
    #allocation3 [shape = 's32[1]{0}', space=sflag, size = 0x4, scoped, tag = 'scoped memory for tpu_custom_call.1']
    #allocation4 [shape = 's32[1]{0}', space=sflag, size = 0x4, scoped, tag = 'scoped memory for tpu_custom_call.1']
    #allocation5 [shape = 'u8[8192]{0}', space=vmem, size = 0x2000, scoped, tag = 'output window, operand 0, single buffered']
    %6 = vsyncpa [#allocation3], 0
    %7 = vsyncpa [#allocation4], 0
    // Predicated region
    $region2: #{tpu_custom_call.1} parent=1 // pred_check
      _
    $region3: #{tpu_custom_call.1} parent=1 // pred_check_branch
      %9 = sbr.rel (0) target = $region5
    $region4: #{tpu_custom_call.1} parent=1 // pred_region
      %s11 = ssub.s32 256, 256
      %12 = vsyncadd [#allocation3], %s11
      %s14 = sshll.u32 [#allocation2], 4
      %s15 = int_to_ptr.vmem [resolvable:$true] %s14
      %17 = dma.hbm_to_vmem [thread:$0]  %s0, 256, %s15, [#allocation3]
    $region5: #{tpu_custom_call.1} parent=1 // pred_fallthru
      _
    // Predicated region
    $region6: #{tpu_custom_call.1} parent=1 // pred_check
      _
    $region7: #{tpu_custom_call.1} parent=1 // pred_check_branch
      %19 = sbr.rel (0) target = $region9
    $region8: #{tpu_custom_call.1} parent=1 // pred_region
      %20 = dma.done [#allocation3], 256
    $region9: #{tpu_custom_call.1} parent=1 // pred_fallthru
      _
    %v21 = vld [vmem:[#allocation2] sm:$0xff]
    %v22 = vld [vmem:[#allocation2 + $0x8] sm:$0xff]
    %v23 = vmin.f32 %v21, 20.0
    %v24 = vmin.f32 %v22, 20.0
    %v25 = vmul.f32 %v23, 1.442695
    %v26 = vpow.pop %v25
    %v27 = vmul.f32 %v24, 1.442695
    %v28 = vpow.pop %v27
    %v29 = vadd.f32 %v26, 2.0
    %v30 = vadd.f32 %v28, 2.0
    %v31 = vmul.f32 %v26, %v29
    %v32 = vmul.f32 %v28, %v30
    %v33 = vadd.f32 %v31, 2.0
    %v34 = vadd.f32 %v32, 2.0
    %v35 = vrcp.pop %v33
    %v36 = vmul.f32 %v31, %v35
    %v37 = vrcp.pop %v34
    %v38 = vmul.f32 %v32, %v37
    %v39 = vmul.f32 %v21, %v36
    %v40 = vmul.f32 %v22, %v38
    %vm41 = vcmp.gt.f32.partialorder %v21, 20.0
    %vm42 = vcmp.gt.f32.partialorder %v22, 20.0
    %v43 = vsel %vm41, %v21, %v39
    %v44 = vsel %vm42, %v22, %v40
    %45 = vst [vmem:[#allocation5] sm:$0xff] %v43
    %46 = vst [vmem:[#allocation5 + $0x8] sm:$0xff] %v44
    // Predicated region
    $region10: #{tpu_custom_call.1} parent=1 // pred_check
      _
    $region11: #{tpu_custom_call.1} parent=1 // pred_check_branch
      %48 = sbr.rel (0) target = $region13
    $region12: #{tpu_custom_call.1} parent=1 // pred_region
      %s50 = ssub.s32 256, 256
      %51 = vsyncadd [#allocation4], %s50
      %s53 = sshll.u32 [#allocation5], 4
      %s54 = int_to_ptr.vmem [resolvable:$true] %s53
      %56 = dma.vmem_to_hbm [thread:$0]  %s54, 256, %s1, [#allocation4]
    $region13: #{tpu_custom_call.1} parent=1 // pred_fallthru
      _
    // Predicated region
    $region14: #{tpu_custom_call.1} parent=1 // pred_check
      _
    $region15: #{tpu_custom_call.1} parent=1 // pred_check_branch
      %58 = sbr.rel (0) target = $region17
    $region16: #{tpu_custom_call.1} parent=1 // pred_region
      %59 = dma.done [#allocation4], 256
    $region17: #{tpu_custom_call.1} parent=1 // pred_fallthru
      _
    %60 = vsyncpa [#allocation3], 1
    %61 = vsyncpa [#allocation4], 1

</llo_original>
